<compile_context>
chip_gen: v7x
topology: tpu7x:2x2x1
jax: 0.10.0
libtpu: 0.0.40
codegen_flags: <defaults>
</compile_context>

<pallas_src>
import functools

import jax
import jax.numpy as jnp
import numpy as np
from jax import lax
from jax.experimental import pallas as pl
from jax.experimental.pallas import tpu as pltpu


def _round_up(x, m):
    return ((x + m - 1) // m) * m


def _cdiv(a, b):
    return (a + b - 1) // b


# ----------------------------------------------------------------------------
# Pallas kernels: fused (positive -> MLP-folded table, negative -> extra
# embedding) gather with the diffusion-axis replication folded into the
# lane-dense output tile.
# ----------------------------------------------------------------------------
def _gather_tile(idx_ref, table_ref, *, n_time, seg_pad):
    # idx_ref:   [tp, 1]        int32 raw state indices (one per output row)
    # table_ref: [seg_pad, LB]  f32   stacked table, column-tiled LB//E times
    idx = idx_ref[...]                                     # load once
    is_pos = idx >= 0
    # remap hoisted & vectorized once per tile: pos -> row idx, neg -> T+(-i-1)
    col = jnp.where(is_pos, idx, n_time + (-idx - 1))      # [tp, 1]
    iota = lax.broadcasted_iota(jnp.int32, (1, seg_pad), 1)
    # single fused compare/select -> one-hot (no astype+add accumulation loop)
    onehot = jnp.where(col == iota, 1.0, 0.0).astype(jnp.float32)   # [tp, seg_pad]
    # One MXU matmul emits the replicated lane-dense [tp, LB] tile exactly.
    return jnp.dot(onehot, table_ref[...],
                   precision=lax.Precision.HIGHEST,
                   preferred_element_type=jnp.float32)


def _kernel_single(idx_ref, table_ref, out_ref, *, n_time, seg_pad):
    out_ref[...] = _gather_tile(idx_ref, table_ref, n_time=n_time, seg_pad=seg_pad)


def _kernel_rep(idx_ref, table_ref, out_ref, acc_ref, *, n_time, seg_pad):
    # Replication grid axis: compute once (d == 0), pure store for every chunk.
    @pl.when(pl.program_id(1) == 0)
    def _():
        acc_ref[...] = _gather_tile(idx_ref, table_ref,
                                    n_time=n_time, seg_pad=seg_pad)
    out_ref[...] = acc_ref[...]


# ----------------------------------------------------------------------------
# One-time parameter preprocessing (hoisted off the per-call hot path)
# ----------------------------------------------------------------------------
def fold_params(params):
    """Fold Linear->SiLU->Linear into the static sinusoidal table and stack it
    with the negative-index embedding table.  Returns (table [seg_pad, E], T)."""
    temb, w1, b1, w2, b2, negemb = params
    h = temb @ w1 + b1
    h = h * jax.nn.sigmoid(h)                              # SiLU
    mlp_table = h @ w2 + b2                                # [T, E]
    stacked = jnp.concatenate([mlp_table, negemb], axis=0)  # [T+K, E]
    seg = stacked.shape[0]
    seg_pad = _round_up(seg, 8)
    stacked = jnp.pad(stacked, ((0, seg_pad - seg), (0, 0)))
    return stacked, int(temb.shape[0])


# ----------------------------------------------------------------------------
# Forward wrapper
# ----------------------------------------------------------------------------
def smooth_embedding_forward(state_idx, num_diffusion_timesteps, table, n_time, *,
                             tile_rows=1024, max_lane_block=2048):
    """state_idx: [B, Ttask] int32 -> [B, Ttask, num_diffusion_timesteps, E]."""
    seg_pad, E = table.shape
    B, Ttask = state_idx.shape
    N = B * Ttask
    Tdiff = int(num_diffusion_timesteps)
    W = Tdiff * E                      # replicated lane width per output row

    # --- lane chunking of the (n, Tdiff*E) output row -------------------------
    # TODO(synk): when Tdiff*E < 128 the full-width output block falls back to
    # masked (vst.msk) stores; pad lanes to 128 only if a consumer can absorb
    # the padded layout without a slice copy.
    if W <= max_lane_block:
        r = Tdiff                                          # single lane block
    else:
        cands = [q for q in range(1, Tdiff + 1)
                 if Tdiff % q == 0 and q * E <= max_lane_block
                 and (q * E) % 128 == 0]
        r = max(cands) if cands else Tdiff                 # fallback: full width
    LB = r * E
    n_rep = Tdiff // r

    # Column-tiled table chunk: one-hot row @ table_rep emits r copies of the
    # selected embedding -> diffusion broadcast fused into the kernel store.
    table_rep = jnp.tile(table, (1, r))                    # [seg_pad, LB]

    # --- row tile size: big (overhead amortization), VMEM bounded, grid >= 2 --
    vmem_tile_budget = 4 * 1024 * 1024                     # bytes per out tile
    tp_cap = max(8, (vmem_tile_budget // (LB * 4)) // 8 * 8)
    tp = min(tile_rows, tp_cap, _round_up(N, 8))
    while tp > 256 and _cdiv(N, tp) < 2:                   # both v7x cores busy
        tp = max(8, _round_up(tp // 2, 8))
    grid_rows = _cdiv(N, tp)

    idx2d = state_idx.reshape(N, 1).astype(jnp.int32)

    # TODO(synk): for total_time + num_extra_embeddings >> ~10^2, replace the
    # one-hot MXU gather with a scalar-prefetch / DMA row gather (one-hot width
    # and resident-table VMEM grow linearly in T+K).
    if n_rep == 1:
        kernel = functools.partial(_kernel_single, n_time=n_time, seg_pad=seg_pad)
        scratch = []
    else:
        kernel = functools.partial(_kernel_rep, n_time=n_time, seg_pad=seg_pad)
        scratch = [pltpu.VMEM((tp, LB), jnp.float32)]

    out2d = pl.pallas_call(
        kernel,
        out_shape=jax.ShapeDtypeStruct((N, W), jnp.float32),
        grid_spec=pltpu.PrefetchScalarGridSpec(
            num_scalar_prefetch=0,
            grid=(grid_rows, n_rep),
            in_specs=[
                pl.BlockSpec((tp, 1), lambda i, d: (i, 0)),          # row indices
                pl.BlockSpec((seg_pad, LB), lambda i, d: (0, 0)),    # resident table
            ],
            out_specs=pl.BlockSpec((tp, LB), lambda i, d: (i, d)),
            scratch_shapes=scratch,
        ),
        compiler_params=pltpu.CompilerParams(
            dimension_semantics=("parallel", "arbitrary")),
    )(idx2d, table_rep)

    # [N, Tdiff*E] row-major is byte-identical to [B, Ttask, Tdiff, E]: free reshape.
    return out2d.reshape(B, Ttask, Tdiff, E)


# ----------------------------------------------------------------------------
# Deterministic parameter construction (mirrors __init__ shapes)
# ----------------------------------------------------------------------------
def make_params(total_time, time_embedding_dim, num_extra_embeddings, key):
    E = time_embedding_dim
    assert E % 2 == 0

    # sinusoidal time-embedding table (same formula as TimeEmbeddingBlock.__init__)
    factor = 10000.0 ** (2.0 * jnp.arange(E // 2, dtype=jnp.float32) / E)     # [E/2]
    times = jnp.arange(1, total_time + 1, dtype=jnp.float32)[:, None] / factor[None, :]
    temb = jnp.concatenate([jnp.sin(times), jnp.cos(times)], axis=1)          # [T, E]

    k1, k2, k3, k4, k5 = jax.random.split(key, 5)
    # weights stored as [in, out] so the forward computes x @ W + b
    w1 = jax.random.normal(k1, (E, E), jnp.float32) * 0.1
    b1 = jax.random.normal(k2, (1, E), jnp.float32) * 0.1
    w2 = jax.random.normal(k3, (E, E), jnp.float32) * 0.1
    b2 = jax.random.normal(k4, (1, E), jnp.float32) * 0.1
    negemb = jax.random.normal(k5, (num_extra_embeddings, E), jnp.float32)    # [K, E]
    return (temb, w1, b1, w2, b2, negemb)


# ----------------------------------------------------------------------------
# Pure-JAX reference (mirrors the PyTorch forward)
# ----------------------------------------------------------------------------
def reference_forward(state_idx, num_diffusion_timesteps, params):
    temb, w1, b1, w2, b2, negemb = params
    idx = state_idx.astype(jnp.int32)
    is_pos = idx >= 0
    pos_i = jnp.where(is_pos, idx, 0)
    neg_i = jnp.where(is_pos, 0, -idx - 1)

    embs = temb[pos_i]                                   # [B, Ttask, E]
    h = embs @ w1 + b1
    h = h * jax.nn.sigmoid(h)
    h = h @ w2 + b2
    neg = negemb[neg_i]                                  # [B, Ttask, E]
    per_step = jnp.where(is_pos[..., None], h, neg)      # [B, Ttask, E]
    B, Ttask = idx.shape
    E = temb.shape[1]
    return jnp.broadcast_to(per_step[:, :, None, :],
                            (B, Ttask, num_diffusion_timesteps, E))


if __name__ == "__main__":
    total_time = 10                 # T
    time_embedding_dim = 32         # E
    num_extra_embeddings = 4        # K

    key = jax.random.PRNGKey(0)
    pkey, ikey = jax.random.split(key)
    params = make_params(total_time, time_embedding_dim, num_extra_embeddings, pkey)

    # one-time parameter preprocessing (cached across calls)
    table, n_time = fold_params(params)
    table = jax.block_until_ready(table)

    fwd = jax.jit(smooth_embedding_forward, static_argnums=(1, 3))

    # (batch, task_timesteps, num_diffusion_timesteps):
    #   1) basic small shape (Tdiff*E == 128 -> single lane-dense block)
    #   2) odd sizes (partial row tile, lane width not a multiple of 128)
    #   3) large Tdiff (lane chunking + fused in-kernel replication axis)
    configs = [(2, 8, 4), (2, 7, 6), (2, 8, 128)]
    keys = jax.random.split(ikey, len(configs))
    for cfg_key, (batch, ttask, tdiff) in zip(keys, configs):
        state_idx = jax.random.randint(
            cfg_key, (batch, ttask),
            minval=-num_extra_embeddings, maxval=total_time, dtype=jnp.int32)
        out = fwd(state_idx, tdiff, table, n_time)
        out = jax.block_until_ready(out)

        ref = reference_forward(state_idx, tdiff, params)
        np.testing.assert_allclose(np.asarray(out), np.asarray(ref),
                                   rtol=1e-4, atol=1e-5)
        assert out.shape == (batch, ttask, tdiff, time_embedding_dim)
        assert out.dtype == jnp.float32

    print("KERNEL_OK")
</pallas_src>

<mosaic_0001>
module attributes {stable_mosaic.version = 11 : i64} {
  func.func @_kernel_single(%arg0: i32, %arg1: i32, %arg2: memref<16x1xi32, #tpu.memory_space<vmem>>, %arg3: memref<16x128xf32, #tpu.memory_space<vmem>>, %arg4: memref<16x128xf32, #tpu.memory_space<vmem>>) attributes {dimension_semantics = [#tpu.dimension_semantics<parallel>, #tpu.dimension_semantics<arbitrary>], iteration_bounds = array<i64: 1, 1>, scalar_prefetch = 0 : i64, scratch_operands = 0 : i64, tpu.core_type = #tpu.core_type<tc>, window_params = [{transform_indices = @transform_0, window_bounds = array<i64: 16, 1>}, {pipeline_mode = #tpu.pipeline_mode<synchronous>, transform_indices = @transform_1, window_bounds = array<i64: 16, 128>}, {transform_indices = @transform_2, window_bounds = array<i64: 16, 128>}]} {
    %c0 = arith.constant 0 : index
    %c0_0 = arith.constant 0 : index
    %0 = vector.load %arg2[%c0, %c0_0] : memref<16x1xi32, #tpu.memory_space<vmem>>, vector<16x1xi32>
    %c0_i32 = arith.constant 0 : i32
    %1 = vector.broadcast %c0_i32 : i32 to vector<16x1xi32>
    %2 = arith.cmpi sge, %0, %1 : vector<16x1xi32>
    %c0_i32_1 = arith.constant 0 : i32
    %3 = vector.broadcast %c0_i32_1 : i32 to vector<16x1xi32>
    %4 = arith.subi %3, %0 : vector<16x1xi32>
    %c1_i32 = arith.constant 1 : i32
    %5 = vector.broadcast %c1_i32 : i32 to vector<16x1xi32>
    %6 = arith.subi %4, %5 : vector<16x1xi32>
    %c10_i32 = arith.constant 10 : i32
    %7 = vector.broadcast %c10_i32 : i32 to vector<16x1xi32>
    %8 = arith.addi %7, %6 : vector<16x1xi32>
    %9 = arith.select %2, %0, %8 : vector<16x1xi1>, vector<16x1xi32>
    %10 = tpu.iota {dimensions = array<i32: 1>} : vector<1x16xi32>
    %11 = vector.broadcast %9 : vector<16x1xi32> to vector<16x16xi32>
    %12 = vector.broadcast %10 : vector<1x16xi32> to vector<16x16xi32>
    %13 = arith.cmpi eq, %11, %12 : vector<16x16xi32>
    %cst = arith.constant 1.000000e+00 : f32
    %cst_2 = arith.constant 0.000000e+00 : f32
    %14 = vector.broadcast %cst : f32 to vector<16x16xf32>
    %15 = vector.broadcast %cst_2 : f32 to vector<16x16xf32>
    %16 = arith.select %13, %14, %15 : vector<16x16xi1>, vector<16x16xf32>
    %c0_3 = arith.constant 0 : index
    %c0_4 = arith.constant 0 : index
    %17 = vector.load %arg3[%c0_3, %c0_4] : memref<16x128xf32, #tpu.memory_space<vmem>>, vector<16x128xf32>
    %cst_5 = arith.constant dense<0.000000e+00> : vector<16x128xf32>
    %18 = tpu.matmul %16, %17, %cst_5 {dimension_numbers = #tpu.dot_dimension_numbers<[1], [0], [0], [1], [0, 0, 1, 1], [], []>, precision = #tpu.contract_precision<fp32>} : vector<16x16xf32>, vector<16x128xf32>, vector<16x128xf32> -> vector<16x128xf32>
    %c0_6 = arith.constant 0 : index
    %c0_7 = arith.constant 0 : index
    %19 = vector.load %arg4[%c0_6, %c0_7] : memref<16x128xf32, #tpu.memory_space<vmem>>, vector<16x128xf32>
    tpu.vector_store %arg4[%c0_6, %c0_7], %18 {strides = array<i32>} : memref<16x128xf32, #tpu.memory_space<vmem>>, vector<16x128xf32>,
    return
  }
  func.func @transform_0(%arg0: i32, %arg1: i32) -> (i32, i32) {
    %c0_i32 = arith.constant 0 : i32
    %c0_i32_0 = arith.constant 0 : i32
    return %arg0, %c0_i32 : i32, i32
  }
  func.func @transform_1(%arg0: i32, %arg1: i32) -> (i32, i32) {
    %c0_i32 = arith.constant 0 : i32
    %c0_i32_0 = arith.constant 0 : i32
    %c0_i32_1 = arith.constant 0 : i32
    return %c0_i32, %c0_i32_0 : i32, i32
  }
  func.func @transform_2(%arg0: i32, %arg1: i32) -> (i32, i32) {
    %c0_i32 = arith.constant 0 : i32
    return %arg0, %arg1 : i32, i32
  }
}

</mosaic_0001>

<llo_original>
// kernel: tile.9
$region0: #{tile.9}
  %s0 = inlined_call_operand.vmem [shape: f32[16,4,32], index: 0, kind: input, shape index: {}]
  %s1 = inlined_call_operand.vmem [shape: f32[16,128], index: 1, kind: output, shape index: {}]
  $region1: #{tile.9} parent=0
    #allocation0 [shape = 'u8[65536]{0}', space=vmem, size = 0x10000, scoped, tag = 'scoped mem for input reshape']
    %s3 = sshllo.u32 0, 4
    %s4 = smul.addr 4, 15
    %s5 = scalar_lea.vmem %s0, %s4
    %v6 = vld [vmem:[%s5] sm:%s3]
    %s7 = scalar_lea.vmem [#allocation0], 120
    %8 = vst [vmem:[%s7] sm:%s3] %v6
    %s9 = smul.addr 4, 14
    %s10 = scalar_lea.vmem %s0, %s9
    %v11 = vld [vmem:[%s10] sm:%s3]
    %s12 = scalar_lea.vmem [#allocation0], 112
    %13 = vst [vmem:[%s12] sm:%s3] %v11
    %s14 = smul.addr 4, 13
    %s15 = scalar_lea.vmem %s0, %s14
    %v16 = vld [vmem:[%s15] sm:%s3]
    %s17 = scalar_lea.vmem [#allocation0], 104
    %18 = vst [vmem:[%s17] sm:%s3] %v16
    %s19 = smul.addr 4, 12
    %s20 = scalar_lea.vmem %s0, %s19
    %v21 = vld [vmem:[%s20] sm:%s3]
    %s22 = scalar_lea.vmem [#allocation0], 96
    %23 = vst [vmem:[%s22] sm:%s3] %v21
    %s24 = smul.addr 4, 11
    %s25 = scalar_lea.vmem %s0, %s24
    %v26 = vld [vmem:[%s25] sm:%s3]
    %s27 = scalar_lea.vmem [#allocation0], 88
    %28 = vst [vmem:[%s27] sm:%s3] %v26
    %s29 = smul.addr 4, 10
    %s30 = scalar_lea.vmem %s0, %s29
    %v31 = vld [vmem:[%s30] sm:%s3]
    %s32 = scalar_lea.vmem [#allocation0], 80
    %33 = vst [vmem:[%s32] sm:%s3] %v31
    %s34 = smul.addr 4, 9
    %s35 = scalar_lea.vmem %s0, %s34
    %v36 = vld [vmem:[%s35] sm:%s3]
    %s37 = scalar_lea.vmem [#allocation0], 72
    %38 = vst [vmem:[%s37] sm:%s3] %v36
    %s39 = smul.addr 4, 8
    %s40 = scalar_lea.vmem %s0, %s39
    %v41 = vld [vmem:[%s40] sm:%s3]
    %s42 = scalar_lea.vmem [#allocation0], 64
    %43 = vst [vmem:[%s42] sm:%s3] %v41
    %s44 = smul.addr 4, 7
    %s45 = scalar_lea.vmem %s0, %s44
    %v46 = vld [vmem:[%s45] sm:%s3]
    %s47 = scalar_lea.vmem [#allocation0], 56
    %48 = vst [vmem:[%s47] sm:%s3] %v46
    %s49 = smul.addr 4, 6
    %s50 = scalar_lea.vmem %s0, %s49
    %v51 = vld [vmem:[%s50] sm:%s3]
    %s52 = scalar_lea.vmem [#allocation0], 48
    %53 = vst [vmem:[%s52] sm:%s3] %v51
    %s54 = smul.addr 4, 5
    %s55 = scalar_lea.vmem %s0, %s54
    %v56 = vld [vmem:[%s55] sm:%s3]
    %s57 = scalar_lea.vmem [#allocation0], 40
    %58 = vst [vmem:[%s57] sm:%s3] %v56
    %s59 = smul.addr 4, 4
    %s60 = scalar_lea.vmem %s0, %s59
    %v61 = vld [vmem:[%s60] sm:%s3]
    %s62 = scalar_lea.vmem [#allocation0], 32
    %63 = vst [vmem:[%s62] sm:%s3] %v61
    %s64 = smul.addr 4, 3
    %s65 = scalar_lea.vmem %s0, %s64
    %v66 = vld [vmem:[%s65] sm:%s3]
    %s67 = scalar_lea.vmem [#allocation0], 24
    %68 = vst [vmem:[%s67] sm:%s3] %v66
    %s69 = smul.addr 4, 2
    %s70 = scalar_lea.vmem %s0, %s69
    %v71 = vld [vmem:[%s70] sm:%s3]
    %s72 = scalar_lea.vmem [#allocation0], 16
    %73 = vst [vmem:[%s72] sm:%s3] %v71
    %s74 = scalar_lea.vmem %s0, 4
    %v75 = vld [vmem:[%s74] sm:%s3]
    %s76 = scalar_lea.vmem [#allocation0], 8
    %77 = vst [vmem:[%s76] sm:%s3] %v75
    %v78 = vld [vmem:[%s0] sm:%s3]
    %79 = vst [vmem:[#allocation0] sm:%s3] %v78
    %v80 = vld [vmem:[#allocation0] ss:$8 sm:$0xf]
    %v81 = vld [vmem:[#allocation0] ss:$8 sm:$0xf0]
    %vm82 = vcmask 1047556
    %v83 = vsel %vm82, %v81, %v80
    %vm84 = vcmask 261120
    %85 = vst.msk [vmem:[%s1] sm:$0xff] %vm84, %v83
    %s86 = scalar_lea.vmem [#allocation0], 64
    %v87 = vld [vmem:[%s86] ss:$8 sm:$0xf]
    %s88 = scalar_lea.vmem [#allocation0], 64
    %v89 = vld [vmem:[%s88] ss:$8 sm:$0xf0]
    %vm90 = vcmask 1047556
    %v91 = vsel %vm90, %v89, %v87
    %vm92 = vcmask 261120
    %s93 = scalar_lea.vmem %s1, 8
    %94 = vst.msk [vmem:[%s93] sm:$0xff] %vm92, %v91
    %s95 = scalar_lea.vmem [#allocation0], 3
    %v96 = vld [vmem:[%s95] ss:$8 sm:$0xf]
    %s97 = scalar_lea.vmem [#allocation0], 3
    %v98 = vld [vmem:[%s97] ss:$8 sm:$0xf0]
    %vm99 = vcmask 1047556
    %v100 = vsel %vm99, %v98, %v96
    %101 = vrot.lane.b32.xlu0 %v100, 96
    %v102 = vpop.permute.xlu0 %101
    %vm103 = vcmask 1048320
    %104 = vst.msk [vmem:[%s1] sm:$0xff] %vm103, %v102
    %s105 = scalar_lea.vmem [#allocation0], 67
    %v106 = vld [vmem:[%s105] ss:$8 sm:$0xf]
    %s107 = scalar_lea.vmem [#allocation0], 67
    %v108 = vld [vmem:[%s107] ss:$8 sm:$0xf0]
    %vm109 = vcmask 1047556
    %v110 = vsel %vm109, %v108, %v106
    %111 = vrot.lane.b32.xlu0 %v110, 96
    %v112 = vpop.permute.xlu0 %111
    %vm113 = vcmask 1048320
    %s114 = scalar_lea.vmem %s1, 8
    %115 = vst.msk [vmem:[%s114] sm:$0xff] %vm113, %v112
    %s116 = scalar_lea.vmem [#allocation0], 2
    %v117 = vld [vmem:[%s116] ss:$8 sm:$0xf]
    %s118 = scalar_lea.vmem [#allocation0], 2
    %v119 = vld [vmem:[%s118] ss:$8 sm:$0xf0]
    %vm120 = vcmask 1047556
    %v121 = vsel %vm120, %v119, %v117
    %122 = vrot.lane.b32.xlu0 %v121, 64
    %v123 = vpop.permute.xlu0 %122
    %vm124 = vcmask 785920
    %125 = vst.msk [vmem:[%s1] sm:$0xff] %vm124, %v123
    %s126 = scalar_lea.vmem [#allocation0], 66
    %v127 = vld [vmem:[%s126] ss:$8 sm:$0xf]
    %s128 = scalar_lea.vmem [#allocation0], 66
    %v129 = vld [vmem:[%s128] ss:$8 sm:$0xf0]
    %vm130 = vcmask 1047556
    %v131 = vsel %vm130, %v129, %v127
    %132 = vrot.lane.b32.xlu0 %v131, 64
    %v133 = vpop.permute.xlu0 %132
    %vm134 = vcmask 785920
    %s135 = scalar_lea.vmem %s1, 8
    %136 = vst.msk [vmem:[%s135] sm:$0xff] %vm134, %v133
    %s137 = scalar_lea.vmem [#allocation0], 1
    %v138 = vld [vmem:[%s137] ss:$8 sm:$0xf]
    %s139 = scalar_lea.vmem [#allocation0], 1
    %v140 = vld [vmem:[%s139] ss:$8 sm:$0xf0]
    %vm141 = vcmask 1047556
    %v142 = vsel %vm141, %v140, %v138
    %143 = vrot.lane.b32.xlu0 %v142, 32
    %v144 = vpop.permute.xlu0 %143
    %vm145 = vcmask 523520
    %146 = vst.msk [vmem:[%s1] sm:$0xff] %vm145, %v144
    %s147 = scalar_lea.vmem [#allocation0], 65
    %v148 = vld [vmem:[%s147] ss:$8 sm:$0xf]
    %s149 = scalar_lea.vmem [#allocation0], 65
    %v150 = vld [vmem:[%s149] ss:$8 sm:$0xf0]
    %vm151 = vcmask 1047556
    %v152 = vsel %vm151, %v150, %v148
    %153 = vrot.lane.b32.xlu0 %v152, 32
    %v154 = vpop.permute.xlu0 %153
    %vm155 = vcmask 523520
    %s156 = scalar_lea.vmem %s1, 8
    %157 = vst.msk [vmem:[%s156] sm:$0xff] %vm155, %v154

// kernel: smooth_embedding_forward.1
$region0: #{smooth_embedding_forward.1}
  #allocation0 [shape = 'u32[]', space=smem, size = 0x4, offset = 0x4, fixed_abs, tag = 'smem constant byte address 0x4 - core index']
  #allocation1 [shape = 'u32[144,128]{1,0:T(1,128)}', space=vmem, size = 0x12000, scoped, tag = 'internal scratch']
  %s0 = inlined_call_operand.vmem [shape: s32[16,1], index: 0, kind: input, shape index: {}]
  %s1 = inlined_call_operand.vmem [shape: f32[16,128], index: 1, kind: input, shape index: {}]
  %s2 = inlined_call_operand.vmem [shape: f32[16,128], index: 2, kind: output, shape index: {}]
  %s3 = sld [smem:[#allocation0]]
  $region18: #{smooth_embedding_forward.1} parent=0
    _
  %s5 = ssub.s32 1, %s3
  %s6 = scalar_select 0, %s5, %s3
  // Predicated region
  $region2: #{smooth_embedding_forward.1} parent=0 // pred_check
    _
  $region3: #{smooth_embedding_forward.1} parent=0 // pred_check_branch
    %8 = sbr.rel (0) target = $region5
  $region4: #{smooth_embedding_forward.1} parent=0 // pred_region
    _
  $region5: #{smooth_embedding_forward.1} parent=0 // pred_fallthru
    _
  // Predicated region
  $region6: #{smooth_embedding_forward.1} parent=0 // pred_check
    _
  $region7: #{smooth_embedding_forward.1} parent=0 // pred_check_branch
    %10 = sbr.rel (0) target = $region9
  $region8: #{smooth_embedding_forward.1} parent=0 // pred_region
    _
  $region9: #{smooth_embedding_forward.1} parent=0 // pred_fallthru
    _
  %v11 = vld [vmem:[%s0] sm:$0xff]
  %v12 = vld [vmem:[%s0 + $0x8] sm:$0xff]
  %vm13 = vcmp.ge.s32.totalorder %v11, 0
  %vm14 = vcmp.ge.s32.totalorder %v12, 0
  %v15 = vsub.s32 0, %v11
  %v16 = vsub.s32 0, %v12
  %v17 = vsub.s32 %v15, 1
  %v18 = vsub.s32 %v16, 1
  %v19 = vadd.s32 %v17, 10
  %v20 = vadd.s32 %v18, 10
  %v21 = vsel %vm13, %v11, %v19
  %v22 = vsel %vm14, %v12, %v20
  %v23 = vlaneseq
  %v24 = vand.u32 %v23, 127
  %25 = vset.pattern.permute.xlu0 0
  %26 = vperm.xlu0 %25, %v21
  %v27 = vpop.permute.xlu0 %26
  %28 = vset.pattern.permute.xlu0 0
  %29 = vperm.xlu0 %28, %v22
  %v30 = vpop.permute.xlu0 %29
  %vm31 = vcmp.eq.s32.totalorder %v27, %v24
  %vm32 = vcmp.eq.s32.totalorder %v30, %v24
  %v33 = vsel %vm31, 1.0, 0.0
  %v34 = vsel %vm32, 1.0, 0.0
  %v35 = vld [vmem:[%s1] sm:$0xff]
  %v36 = vld [vmem:[%s1 + $0x8] sm:$0xff]
  %vm37 = vcmask 130048
  %v39 = vsel %vm37, %v33, 0
  %v42 = vsel %vm37, %v34, 0
  %44 = vmatprep.subr.mxu0 0.0
  %v45 = vand.u32 %v35, 4294901760
  %46 = vmatpush1.msra.mxu0 %v45
  %47 = vmatprep.subr.mxu0 0.0
  %v48 = vand.u32 %v36, 4294901760
  %49 = vmatpush1.msra.mxu0 %v48
  %50 = vmatprep.subr.mxu0 0.0
  %51 = vmatpush1.msra.mxu0 0.0
  %52 = vmatprep.subr.mxu0 0.0
  %53 = vmatpush1.msra.mxu0 0.0
  %54 = vmatprep.subr.mxu0 0.0
  %55 = vmatpush1.msra.mxu0 0.0
  %56 = vmatprep.subr.mxu0 0.0
  %57 = vmatpush1.msra.mxu0 0.0
  %58 = vmatprep.subr.mxu0 0.0
  %59 = vmatpush1.msra.mxu0 0.0
  %60 = vmatprep.subr.mxu0 0.0
  %61 = vmatpush1.msra.mxu0 0.0
  %62 = vmatprep.subr.mxu0 0.0
  %63 = vmatpush1.msra.mxu0 0.0
  %64 = vmatprep.subr.mxu0 0.0
  %65 = vmatpush1.msra.mxu0 0.0
  %66 = vmatprep.subr.mxu0 0.0
  %67 = vmatpush1.msra.mxu0 0.0
  %68 = vmatprep.subr.mxu0 0.0
  %69 = vmatpush1.msra.mxu0 0.0
  %70 = vmatprep.subr.mxu0 0.0
  %71 = vmatpush1.msra.mxu0 0.0
  %72 = vmatprep.subr.mxu0 0.0
  %73 = vmatpush1.msra.mxu0 0.0
  %74 = vmatprep.subr.mxu0 0.0
  %75 = vmatpush1.msra.mxu0 0.0
  %76 = vmatprep.subr.mxu0 0.0
  %77 = vmatpush1.msra.mxu0 0.0
  %78 = vmatprep.subr.mxu0 0.0
  %79 = vmatpush1.msra.mxu0 0.0
  %80 = vmatprep.subr.mxu0 0.0
  %81 = vmatpush1.msra.mxu0 0.0
  %82 = vmatprep.subr.mxu0 0.0
  %83 = vmatpush1.msra.mxu0 0.0
  %84 = vmatprep.subr.mxu0 0.0
  %85 = vmatpush1.msra.mxu0 0.0
  %86 = vmatprep.subr.mxu0 0.0
  %87 = vmatpush1.msra.mxu0 0.0
  %88 = vmatprep.subr.mxu0 0.0
  %89 = vmatpush1.msra.mxu0 0.0
  %90 = vmatprep.subr.mxu0 0.0
  %91 = vmatpush1.msra.mxu0 0.0
  %92 = vmatprep.subr.mxu0 0.0
  %93 = vmatpush1.msra.mxu0 0.0
  %94 = vmatprep.subr.mxu0 0.0
  %95 = vmatpush1.msra.mxu0 0.0
  %96 = vmatprep.subr.mxu0 0.0
  %97 = vmatpush1.msra.mxu0 0.0
  %98 = vmatprep.subr.mxu0 0.0
  %99 = vmatpush1.msra.mxu0 0.0
  %100 = vmatprep.subr.mxu0 0.0
  %101 = vmatpush1.msra.mxu0 0.0
  %102 = vmatprep.subr.mxu0 0.0
  %103 = vmatpush1.msra.mxu0 0.0
  %104 = vmatprep.subr.mxu0 0.0
  %105 = vmatpush1.msra.mxu0 0.0
  %106 = vmatprep.subr.mxu0 0.0
  %107 = vmatpush1.msra.mxu0 0.0
  %108 = vmatprep.subr.mxu0 0.0
  %109 = vmatpush1.msra.mxu0 0.0
  %110 = vmatprep.mubr.f32.mxu0 0.0
  %v111 = vand.u32 %v39, 4294901760
  %v112 = vsub.f32 %v39, %v111
  %v113 = vand.u32 %v112, 4294901760
  %v114 = vsub.f32 %v112, %v113
  %v115 = vand.u32 %v114, 4294901760
  %116 = vmatmul.mubr.f32.gmra.mrb[0].mxu0 %v115
  %v117 = vpop.f32.mrb[0].mxu0
  %v118 = vadd.f32 0.0, %v117
  %v119 = vpop.f32.mrb[0].mxu0
  %120 = vmatprep.mubr.f32.mxu0 0.0
  %v121 = vand.u32 %v42, 4294901760
  %v122 = vsub.f32 %v42, %v121
  %v123 = vand.u32 %v122, 4294901760
  %v124 = vsub.f32 %v122, %v123
  %v125 = vand.u32 %v124, 4294901760
  %126 = vmatmul.mubr.f32.gmra.mrb[0].mxu0 %v125
  %v127 = vpop.f32.mrb[0].mxu0
  %v128 = vadd.f32 0.0, %v127
  %v129 = vpop.f32.mrb[0].mxu0
  %130 = vdwg.mxu0
  %131 = vmatprep.subr.mxu0 0.0
  %v132 = vand.u32 %v35, 4294901760
  %v133 = vsub.f32 %v35, %v132
  %v134 = vand.u32 %v133, 4294901760
  %v135 = vsub.f32 %v133, %v134
  %v136 = vand.u32 %v135, 4294901760
  %137 = vmatpush1.msra.mxu0 %v136
  %138 = vmatprep.subr.mxu0 0.0
  %v139 = vand.u32 %v36, 4294901760
  %v140 = vsub.f32 %v36, %v139
  %v141 = vand.u32 %v140, 4294901760
  %v142 = vsub.f32 %v140, %v141
  %v143 = vand.u32 %v142, 4294901760
  %144 = vmatpush1.msra.mxu0 %v143
  %145 = vmatprep.subr.mxu0 0.0
  %146 = vmatpush1.msra.mxu0 0.0
  %147 = vmatprep.subr.mxu0 0.0
  %148 = vmatpush1.msra.mxu0 0.0
  %149 = vmatprep.subr.mxu0 0.0
  %150 = vmatpush1.msra.mxu0 0.0
  %151 = vmatprep.subr.mxu0 0.0
  %152 = vmatpush1.msra.mxu0 0.0
  %153 = vmatprep.subr.mxu0 0.0
  %154 = vmatpush1.msra.mxu0 0.0
  %155 = vmatprep.subr.mxu0 0.0
  %156 = vmatpush1.msra.mxu0 0.0
  %157 = vmatprep.subr.mxu0 0.0
  %158 = vmatpush1.msra.mxu0 0.0
  %159 = vmatprep.subr.mxu0 0.0
  %160 = vmatpush1.msra.mxu0 0.0
  %161 = vmatprep.subr.mxu0 0.0
  %162 = vmatpush1.msra.mxu0 0.0
  %163 = vmatprep.subr.mxu0 0.0
  %164 = vmatpush1.msra.mxu0 0.0
  %165 = vmatprep.subr.mxu0 0.0
  %166 = vmatpush1.msra.mxu0 0.0
  %167 = vmatprep.subr.mxu0 0.0
  %168 = vmatpush1.msra.mxu0 0.0
  %169 = vmatprep.subr.mxu0 0.0
  %170 = vmatpush1.msra.mxu0 0.0
  %171 = vmatprep.subr.mxu0 0.0
  %172 = vmatpush1.msra.mxu0 0.0
  %173 = vmatprep.subr.mxu0 0.0
  %174 = vmatpush1.msra.mxu0 0.0
  %175 = vmatprep.subr.mxu0 0.0
  %176 = vmatpush1.msra.mxu0 0.0
  %177 = vmatprep.subr.mxu0 0.0
  %178 = vmatpush1.msra.mxu0 0.0
  %179 = vmatprep.subr.mxu0 0.0
  %180 = vmatpush1.msra.mxu0 0.0
  %181 = vmatprep.subr.mxu0 0.0
  %182 = vmatpush1.msra.mxu0 0.0
  %183 = vmatprep.subr.mxu0 0.0
  %184 = vmatpush1.msra.mxu0 0.0
  %185 = vmatprep.subr.mxu0 0.0
  %186 = vmatpush1.msra.mxu0 0.0
  %187 = vmatprep.subr.mxu0 0.0
  %188 = vmatpush1.msra.mxu0 0.0
  %189 = vmatprep.subr.mxu0 0.0
  %190 = vmatpush1.msra.mxu0 0.0
  %191 = vmatprep.subr.mxu0 0.0
  %192 = vmatpush1.msra.mxu0 0.0
  %193 = vmatprep.subr.mxu0 0.0
  %194 = vmatpush1.msra.mxu0 0.0
  %195 = vmatprep.subr.mxu0 0.0
  %196 = vmatpush1.msra.mxu0 0.0
  %197 = vmatprep.subr.mxu0 0.0
  %198 = vmatpush1.msra.mxu0 0.0
  %199 = vmatprep.subr.mxu0 0.0
  %200 = vmatpush1.msra.mxu0 0.0
  %201 = vmatprep.subr.mxu0 0.0
  %202 = vmatpush1.msra.mxu0 0.0
  %203 = vmatprep.subr.mxu0 0.0
  %204 = vmatpush1.msra.mxu0 0.0
  %205 = vmatprep.mubr.f32.mxu0 0.0
  %v206 = vand.u32 %v39, 4294901760
  %207 = vmatmul.mubr.f32.gmra.mrb[0].mxu0 %v206
  %v208 = vpop.f32.mrb[0].mxu0
  %v209 = vadd.f32 %v118, %v208
  %v210 = vpop.f32.mrb[0].mxu0
  %211 = vmatprep.mubr.f32.mxu0 0.0
  %v212 = vand.u32 %v42, 4294901760
  %213 = vmatmul.mubr.f32.gmra.mrb[0].mxu0 %v212
  %v214 = vpop.f32.mrb[0].mxu0
  %v215 = vadd.f32 %v128, %v214
  %v216 = vpop.f32.mrb[0].mxu0
  %217 = vdwg.mxu0
  %218 = vmatprep.subr.mxu0 0.0
  %v219 = vand.u32 %v35, 4294901760
  %v220 = vsub.f32 %v35, %v219
  %221 = vmatpush1.msra.mxu0 %v220
  %222 = vmatprep.subr.mxu0 0.0
  %v223 = vand.u32 %v36, 4294901760
  %v224 = vsub.f32 %v36, %v223
  %225 = vmatpush1.msra.mxu0 %v224
  %226 = vmatprep.subr.mxu0 0.0
  %227 = vmatpush1.msra.mxu0 0.0
  %228 = vmatprep.subr.mxu0 0.0
  %229 = vmatpush1.msra.mxu0 0.0
  %230 = vmatprep.subr.mxu0 0.0
  %231 = vmatpush1.msra.mxu0 0.0
  %232 = vmatprep.subr.mxu0 0.0
  %233 = vmatpush1.msra.mxu0 0.0
  %234 = vmatprep.subr.mxu0 0.0
  %235 = vmatpush1.msra.mxu0 0.0
  %236 = vmatprep.subr.mxu0 0.0
  %237 = vmatpush1.msra.mxu0 0.0
  %238 = vmatprep.subr.mxu0 0.0
  %239 = vmatpush1.msra.mxu0 0.0
  %240 = vmatprep.subr.mxu0 0.0
  %241 = vmatpush1.msra.mxu0 0.0
  %242 = vmatprep.subr.mxu0 0.0
  %243 = vmatpush1.msra.mxu0 0.0
  %244 = vmatprep.subr.mxu0 0.0
  %245 = vmatpush1.msra.mxu0 0.0
  %246 = vmatprep.subr.mxu0 0.0
  %247 = vmatpush1.msra.mxu0 0.0
  %248 = vmatprep.subr.mxu0 0.0
  %249 = vmatpush1.msra.mxu0 0.0
  %250 = vmatprep.subr.mxu0 0.0
  %251 = vmatpush1.msra.mxu0 0.0
  %252 = vmatprep.subr.mxu0 0.0
  %253 = vmatpush1.msra.mxu0 0.0
  %254 = vmatprep.subr.mxu0 0.0
  %255 = vmatpush1.msra.mxu0 0.0
  %256 = vmatprep.subr.mxu0 0.0
  %257 = vmatpush1.msra.mxu0 0.0
  %258 = vmatprep.subr.mxu0 0.0
  %259 = vmatpush1.msra.mxu0 0.0
  %260 = vmatprep.subr.mxu0 0.0
  %261 = vmatpush1.msra.mxu0 0.0
  %262 = vmatprep.subr.mxu0 0.0
  %263 = vmatpush1.msra.mxu0 0.0
  %264 = vmatprep.subr.mxu0 0.0
  %265 = vmatpush1.msra.mxu0 0.0
  %266 = vmatprep.subr.mxu0 0.0
  %267 = vmatpush1.msra.mxu0 0.0
  %268 = vmatprep.subr.mxu0 0.0
  %269 = vmatpush1.msra.mxu0 0.0
  %270 = vmatprep.subr.mxu0 0.0
  %271 = vmatpush1.msra.mxu0 0.0
  %272 = vmatprep.subr.mxu0 0.0
  %273 = vmatpush1.msra.mxu0 0.0
  %274 = vmatprep.subr.mxu0 0.0
  %275 = vmatpush1.msra.mxu0 0.0
  %276 = vmatprep.subr.mxu0 0.0
  %277 = vmatpush1.msra.mxu0 0.0
  %278 = vmatprep.subr.mxu0 0.0
  %279 = vmatpush1.msra.mxu0 0.0
  %280 = vmatprep.subr.mxu0 0.0
  %281 = vmatpush1.msra.mxu0 0.0
  %282 = vmatprep.subr.mxu0 0.0
  %283 = vmatpush1.msra.mxu0 0.0
  %284 = vmatprep.subr.mxu0 0.0
  %285 = vmatpush1.msra.mxu0 0.0
  %286 = vmatprep.mubr.f32.mxu0 0.0
  %v287 = vand.u32 %v39, 4294901760
  %v288 = vsub.f32 %v39, %v287
  %289 = vmatmul.mubr.f32.gmra.mrb[0].mxu0 %v288
  %v290 = vpop.f32.mrb[0].mxu0
  %v291 = vadd.f32 %v209, %v290
  %v292 = vpop.f32.mrb[0].mxu0
  %293 = vmatprep.mubr.f32.mxu0 0.0
  %v294 = vand.u32 %v42, 4294901760
  %v295 = vsub.f32 %v42, %v294
  %296 = vmatmul.mubr.f32.gmra.mrb[0].mxu0 %v295
  %v297 = vpop.f32.mrb[0].mxu0
  %v298 = vadd.f32 %v215, %v297
  %v299 = vpop.f32.mrb[0].mxu0
  %300 = vdwg.mxu0
  %301 = vmatprep.subr.mxu0 0.0
  %v302 = vand.u32 %v35, 4294901760
  %303 = vmatpush1.msra.mxu0 %v302
  %304 = vmatprep.subr.mxu0 0.0
  %v305 = vand.u32 %v36, 4294901760
  %306 = vmatpush1.msra.mxu0 %v305
  %307 = vmatprep.subr.mxu0 0.0
  %308 = vmatpush1.msra.mxu0 0.0
  %309 = vmatprep.subr.mxu0 0.0
  %310 = vmatpush1.msra.mxu0 0.0
  %311 = vmatprep.subr.mxu0 0.0
  %312 = vmatpush1.msra.mxu0 0.0
  %313 = vmatprep.subr.mxu0 0.0
  %314 = vmatpush1.msra.mxu0 0.0
  %315 = vmatprep.subr.mxu0 0.0
  %316 = vmatpush1.msra.mxu0 0.0
  %317 = vmatprep.subr.mxu0 0.0
  %318 = vmatpush1.msra.mxu0 0.0
  %319 = vmatprep.subr.mxu0 0.0
  %320 = vmatpush1.msra.mxu0 0.0
  %321 = vmatprep.subr.mxu0 0.0
  %322 = vmatpush1.msra.mxu0 0.0
  %323 = vmatprep.subr.mxu0 0.0
  %324 = vmatpush1.msra.mxu0 0.0
  %325 = vmatprep.subr.mxu0 0.0
  %326 = vmatpush1.msra.mxu0 0.0
  %327 = vmatprep.subr.mxu0 0.0
  %328 = vmatpush1.msra.mxu0 0.0
  %329 = vmatprep.subr.mxu0 0.0
  %330 = vmatpush1.msra.mxu0 0.0
  %331 = vmatprep.subr.mxu0 0.0
  %332 = vmatpush1.msra.mxu0 0.0
  %333 = vmatprep.subr.mxu0 0.0
  %334 = vmatpush1.msra.mxu0 0.0
  %335 = vmatprep.subr.mxu0 0.0
  %336 = vmatpush1.msra.mxu0 0.0
  %337 = vmatprep.subr.mxu0 0.0
  %338 = vmatpush1.msra.mxu0 0.0
  %339 = vmatprep.subr.mxu0 0.0
  %340 = vmatpush1.msra.mxu0 0.0
  %341 = vmatprep.subr.mxu0 0.0
  %342 = vmatpush1.msra.mxu0 0.0
  %343 = vmatprep.subr.mxu0 0.0
  %344 = vmatpush1.msra.mxu0 0.0
  %345 = vmatprep.subr.mxu0 0.0
  %346 = vmatpush1.msra.mxu0 0.0
  %347 = vmatprep.subr.mxu0 0.0
  %348 = vmatpush1.msra.mxu0 0.0
  %349 = vmatprep.subr.mxu0 0.0
  %350 = vmatpush1.msra.mxu0 0.0
  %351 = vmatprep.subr.mxu0 0.0
  %352 = vmatpush1.msra.mxu0 0.0
  %353 = vmatprep.subr.mxu0 0.0
  %354 = vmatpush1.msra.mxu0 0.0
  %355 = vmatprep.subr.mxu0 0.0
  %356 = vmatpush1.msra.mxu0 0.0
  %357 = vmatprep.subr.mxu0 0.0
  %358 = vmatpush1.msra.mxu0 0.0
  %359 = vmatprep.subr.mxu0 0.0
  %360 = vmatpush1.msra.mxu0 0.0
  %361 = vmatprep.subr.mxu0 0.0
  %362 = vmatpush1.msra.mxu0 0.0
  %363 = vmatprep.subr.mxu0 0.0
  %364 = vmatpush1.msra.mxu0 0.0
  %365 = vmatprep.subr.mxu0 0.0
  %366 = vmatpush1.msra.mxu0 0.0
  %367 = vmatprep.mubr.f32.mxu0 0.0
  %v368 = vand.u32 %v39, 4294901760
  %v369 = vsub.f32 %v39, %v368
  %v370 = vand.u32 %v369, 4294901760
  %371 = vmatmul.mubr.f32.gmra.mrb[0].mxu0 %v370
  %v372 = vpop.f32.mrb[0].mxu0
  %v373 = vadd.f32 %v291, %v372
  %v374 = vpop.f32.mrb[0].mxu0
  %375 = vmatprep.mubr.f32.mxu0 0.0
  %v376 = vand.u32 %v42, 4294901760
  %v377 = vsub.f32 %v42, %v376
  %v378 = vand.u32 %v377, 4294901760
  %379 = vmatmul.mubr.f32.gmra.mrb[0].mxu0 %v378
  %v380 = vpop.f32.mrb[0].mxu0
  %v381 = vadd.f32 %v298, %v380
  %v382 = vpop.f32.mrb[0].mxu0
  %383 = vdwg.mxu0
  %384 = vmatprep.subr.mxu0 0.0
  %v385 = vand.u32 %v35, 4294901760
  %v386 = vsub.f32 %v35, %v385
  %v387 = vand.u32 %v386, 4294901760
  %388 = vmatpush1.msra.mxu0 %v387
  %389 = vmatprep.subr.mxu0 0.0
  %v390 = vand.u32 %v36, 4294901760
  %v391 = vsub.f32 %v36, %v390
  %v392 = vand.u32 %v391, 4294901760
  %393 = vmatpush1.msra.mxu0 %v392
  %394 = vmatprep.subr.mxu0 0.0
  %395 = vmatpush1.msra.mxu0 0.0
  %396 = vmatprep.subr.mxu0 0.0
  %397 = vmatpush1.msra.mxu0 0.0
  %398 = vmatprep.subr.mxu0 0.0
  %399 = vmatpush1.msra.mxu0 0.0
  %400 = vmatprep.subr.mxu0 0.0
  %401 = vmatpush1.msra.mxu0 0.0
  %402 = vmatprep.subr.mxu0 0.0
  %403 = vmatpush1.msra.mxu0 0.0
  %404 = vmatprep.subr.mxu0 0.0
  %405 = vmatpush1.msra.mxu0 0.0
  %406 = vmatprep.subr.mxu0 0.0
  %407 = vmatpush1.msra.mxu0 0.0
  %408 = vmatprep.subr.mxu0 0.0
  %409 = vmatpush1.msra.mxu0 0.0
  %410 = vmatprep.subr.mxu0 0.0
  %411 = vmatpush1.msra.mxu0 0.0
  %412 = vmatprep.subr.mxu0 0.0
  %413 = vmatpush1.msra.mxu0 0.0
  %414 = vmatprep.subr.mxu0 0.0
  %415 = vmatpush1.msra.mxu0 0.0
  %416 = vmatprep.subr.mxu0 0.0
  %417 = vmatpush1.msra.mxu0 0.0
  %418 = vmatprep.subr.mxu0 0.0
  %419 = vmatpush1.msra.mxu0 0.0
  %420 = vmatprep.subr.mxu0 0.0
  %421 = vmatpush1.msra.mxu0 0.0
  %422 = vmatprep.subr.mxu0 0.0
  %423 = vmatpush1.msra.mxu0 0.0
  %424 = vmatprep.subr.mxu0 0.0
  %425 = vmatpush1.msra.mxu0 0.0
  %426 = vmatprep.subr.mxu0 0.0
  %427 = vmatpush1.msra.mxu0 0.0
  %428 = vmatprep.subr.mxu0 0.0
  %429 = vmatpush1.msra.mxu0 0.0
  %430 = vmatprep.subr.mxu0 0.0
  %431 = vmatpush1.msra.mxu0 0.0
  %432 = vmatprep.subr.mxu0 0.0
  %433 = vmatpush1.msra.mxu0 0.0
  %434 = vmatprep.subr.mxu0 0.0
  %435 = vmatpush1.msra.mxu0 0.0
  %436 = vmatprep.subr.mxu0 0.0
  %437 = vmatpush1.msra.mxu0 0.0
  %438 = vmatprep.subr.mxu0 0.0
  %439 = vmatpush1.msra.mxu0 0.0
  %440 = vmatprep.subr.mxu0 0.0
  %441 = vmatpush1.msra.mxu0 0.0
  %442 = vmatprep.subr.mxu0 0.0
  %443 = vmatpush1.msra.mxu0 0.0
  %444 = vmatprep.subr.mxu0 0.0
  %445 = vmatpush1.msra.mxu0 0.0
  %446 = vmatprep.subr.mxu0 0.0
  %447 = vmatpush1.msra.mxu0 0.0
  %448 = vmatprep.subr.mxu0 0.0
  %449 = vmatpush1.msra.mxu0 0.0
  %450 = vmatprep.subr.mxu0 0.0
  %451 = vmatpush1.msra.mxu0 0.0
  %452 = vmatprep.subr.mxu0 0.0
  %453 = vmatpush1.msra.mxu0 0.0
  %454 = vmatprep.mubr.f32.mxu0 0.0
  %v455 = vand.u32 %v39, 4294901760
  %456 = vmatmul.mubr.f32.gmra.mrb[0].mxu0 %v455
  %v457 = vpop.f32.mrb[0].mxu0
  %v458 = vadd.f32 %v373, %v457
  %v459 = vpop.f32.mrb[0].mxu0
  %460 = vmatprep.mubr.f32.mxu0 0.0
  %v461 = vand.u32 %v42, 4294901760
  %462 = vmatmul.mubr.f32.gmra.mrb[0].mxu0 %v461
  %v463 = vpop.f32.mrb[0].mxu0
  %v464 = vadd.f32 %v381, %v463
  %v465 = vpop.f32.mrb[0].mxu0
  %466 = vdwg.mxu0
  %467 = vmatprep.subr.mxu0 0.0
  %v468 = vand.u32 %v35, 4294901760
  %469 = vmatpush1.msra.mxu0 %v468
  %470 = vmatprep.subr.mxu0 0.0
  %v471 = vand.u32 %v36, 4294901760
  %472 = vmatpush1.msra.mxu0 %v471
  %473 = vmatprep.subr.mxu0 0.0
  %474 = vmatpush1.msra.mxu0 0.0
  %475 = vmatprep.subr.mxu0 0.0
  %476 = vmatpush1.msra.mxu0 0.0
  %477 = vmatprep.subr.mxu0 0.0
  %478 = vmatpush1.msra.mxu0 0.0
  %479 = vmatprep.subr.mxu0 0.0
  %480 = vmatpush1.msra.mxu0 0.0
  %481 = vmatprep.subr.mxu0 0.0
  %482 = vmatpush1.msra.mxu0 0.0
  %483 = vmatprep.subr.mxu0 0.0
  %484 = vmatpush1.msra.mxu0 0.0
  %485 = vmatprep.subr.mxu0 0.0
  %486 = vmatpush1.msra.mxu0 0.0
  %487 = vmatprep.subr.mxu0 0.0
  %488 = vmatpush1.msra.mxu0 0.0
  %489 = vmatprep.subr.mxu0 0.0
  %490 = vmatpush1.msra.mxu0 0.0
  %491 = vmatprep.subr.mxu0 0.0
  %492 = vmatpush1.msra.mxu0 0.0
  %493 = vmatprep.subr.mxu0 0.0
  %494 = vmatpush1.msra.mxu0 0.0
  %495 = vmatprep.subr.mxu0 0.0
  %496 = vmatpush1.msra.mxu0 0.0
  %497 = vmatprep.subr.mxu0 0.0
  %498 = vmatpush1.msra.mxu0 0.0
  %499 = vmatprep.subr.mxu0 0.0
  %500 = vmatpush1.msra.mxu0 0.0
  %501 = vmatprep.subr.mxu0 0.0
  %502 = vmatpush1.msra.mxu0 0.0
  %503 = vmatprep.subr.mxu0 0.0
  %504 = vmatpush1.msra.mxu0 0.0
  %505 = vmatprep.subr.mxu0 0.0
  %506 = vmatpush1.msra.mxu0 0.0
  %507 = vmatprep.subr.mxu0 0.0
  %508 = vmatpush1.msra.mxu0 0.0
  %509 = vmatprep.subr.mxu0 0.0
  %510 = vmatpush1.msra.mxu0 0.0
  %511 = vmatprep.subr.mxu0 0.0
  %512 = vmatpush1.msra.mxu0 0.0
  %513 = vmatprep.subr.mxu0 0.0
  %514 = vmatpush1.msra.mxu0 0.0
  %515 = vmatprep.subr.mxu0 0.0
  %516 = vmatpush1.msra.mxu0 0.0
  %517 = vmatprep.subr.mxu0 0.0
  %518 = vmatpush1.msra.mxu0 0.0
  %519 = vmatprep.subr.mxu0 0.0
  %520 = vmatpush1.msra.mxu0 0.0
  %521 = vmatprep.subr.mxu0 0.0
  %522 = vmatpush1.msra.mxu0 0.0
  %523 = vmatprep.subr.mxu0 0.0
  %524 = vmatpush1.msra.mxu0 0.0
  %525 = vmatprep.subr.mxu0 0.0
  %526 = vmatpush1.msra.mxu0 0.0
  %527 = vmatprep.subr.mxu0 0.0
  %528 = vmatpush1.msra.mxu0 0.0
  %529 = vmatprep.subr.mxu0 0.0
  %530 = vmatpush1.msra.mxu0 0.0
  %531 = vmatprep.subr.mxu0 0.0
  %532 = vmatpush1.msra.mxu0 0.0
  %533 = vmatprep.mubr.f32.mxu0 0.0
  %v534 = vand.u32 %v39, 4294901760
  %535 = vmatmul.mubr.f32.gmra.mrb[0].mxu0 %v534
  %v536 = vpop.f32.mrb[0].mxu0
  %v537 = vadd.f32 %v458, %v536
  %v538 = vpop.f32.mrb[0].mxu0
  %539 = vmatprep.mubr.f32.mxu0 0.0
  %v540 = vand.u32 %v42, 4294901760
  %541 = vmatmul.mubr.f32.gmra.mrb[0].mxu0 %v540
  %v542 = vpop.f32.mrb[0].mxu0
  %v543 = vadd.f32 %v464, %v542
  %v544 = vpop.f32.mrb[0].mxu0
  %545 = vdwg.mxu0
  %546 = vst [vmem:[%s2] sm:$0xff] %v537
  %547 = vst [vmem:[%s2 + $0x8] sm:$0xff] %v543
  // Predicated region
  $region10: #{smooth_embedding_forward.1} parent=0 // pred_check
    _
  $region11: #{smooth_embedding_forward.1} parent=0 // pred_check_branch
    %549 = sbr.rel (0) target = $region13
  $region12: #{smooth_embedding_forward.1} parent=0 // pred_region
    _
  $region13: #{smooth_embedding_forward.1} parent=0 // pred_fallthru
    _
  // Predicated region
  $region14: #{smooth_embedding_forward.1} parent=0 // pred_check
    _
  $region15: #{smooth_embedding_forward.1} parent=0 // pred_check_branch
    %551 = sbr.rel (0) target = $region17
  $region16: #{smooth_embedding_forward.1} parent=0 // pred_region
    _
  $region17: #{smooth_embedding_forward.1} parent=0 // pred_fallthru
    _

</llo_original>
